<compile_context>
chip_gen: v7x
topology: tpu7x:2x2x1
jax: 0.10.0
libtpu: 0.0.40
codegen_flags: <defaults>
</compile_context>

<pallas_src>
import numpy as np
import jax
import jax.numpy as jnp
from jax.experimental import pallas as pl
from jax.experimental.pallas import tpu as pltpu

_LANES = 128          # TPU lane width; lane-dense output slabs -> unmasked full-line stores
_MAX_TILE_ROWS = 512  # 512x128 f32 = 256 KiB/buffer; 2 in + 2 out double-buffers ~1 MiB (safe on v7x)


def _copy_kernel(x_ref, o_ref):
    # Pure pass-through; the useful work is the pipelined HBM->VMEM->HBM DMA around it.
    o_ref[...] = x_ref[...]


def _pallas_device_copy(x):
    """Materialize `x` on device via a lane-dense, tiled, double-buffered Pallas copy.

    Stands in for `tokens.detach().to(device)` in the PyTorch module.
    """
    orig_shape = x.shape
    dtype = x.dtype
    flat = x.reshape(-1) if x.ndim > 0 else x.reshape(1)
    n = flat.shape[0]

    rows = -(-n // _LANES)                               # ceil(n / 128)
    tile_rows = min(_MAX_TILE_ROWS, -(-rows // 8) * 8)   # multiple of 8 sublanes, capped for v7x VMEM
    padded_rows = -(-rows // tile_rows) * tile_rows
    pad = padded_rows * _LANES - n
    if pad:
        flat = jnp.pad(flat, (0, pad))
    x2d = flat.reshape(padded_rows, _LANES)

    out2d = pl.pallas_call(
        _copy_kernel,
        out_shape=jax.ShapeDtypeStruct((padded_rows, _LANES), dtype),
        grid=(padded_rows // tile_rows,),
        in_specs=[pl.BlockSpec((tile_rows, _LANES), lambda i: (i, 0))],
        out_specs=pl.BlockSpec((tile_rows, _LANES), lambda i: (i, 0)),
        compiler_params=pltpu.CompilerParams(
            dimension_semantics=("parallel",),   # shard row tiles across v7x's 2 TensorCores
            vmem_limit_bytes=32 * 1024 * 1024,   # tiles are tiny; explicit cap stays under v7x VMEM
        ),
    )(x2d)

    out = out2d.reshape(-1)[:n]
    return out.reshape(orig_shape) if x.ndim > 0 else out[0]


def _toy_tokenize(texts, context_length, truncate_text=True):
    # TODO(synk): real CLIP/BPE tokenization is host-side string processing with no Pallas equivalent;
    # deterministic byte-level stand-in used here.
    out = np.zeros((len(texts), context_length), dtype=np.int32)
    for i, t in enumerate(texts):
        ids = [(b % 30000) + 1 for b in t.encode("utf-8")]
        if truncate_text:
            ids = ids[:context_length]
        ids = ids[:context_length]
        out[i, : len(ids)] = ids
    return out


class TextPromptsPreprocessor:
    """JAX/Pallas equivalent of the PyTorch TextPromptsPreprocessor.forward."""

    def __init__(self, text_context_size: int):
        self._text_context_size = text_context_size

    def __call__(self, context: dict) -> dict:
        if "text_prompts" in context:
            prompts = context["text_prompts"]
            tokens_host = _toy_tokenize(
                prompts, context_length=self._text_context_size, truncate_text=True
            )
            # `.detach().to(device)` -> explicit device materialization via the Pallas copy kernel.
            tokens = _pallas_device_copy(jnp.asarray(tokens_host))
            if "text_tokens" not in context:
                context["text_tokens"] = tokens
        return context


if __name__ == "__main__":
    key = jax.random.PRNGKey(0)

    # --- Module-level semantics: small text batch, context length 8 ---
    prompts = ["a photo of a cat", "a painting of a mountain at sunset"]
    pre = TextPromptsPreprocessor(text_context_size=8)

    ctx = {"text_prompts": prompts}
    out_ctx = pre(ctx)
    tokens = out_ctx["text_tokens"]
    jax.block_until_ready(tokens)

    ref_tokens = jnp.asarray(_toy_tokenize(prompts, 8))
    assert tokens.shape == (2, 8), f"token shape mismatch: {tokens.shape}"
    assert tokens.dtype == jnp.int32, f"token dtype mismatch: {tokens.dtype}"
    assert bool(jnp.all(tokens == ref_tokens)), "device-copied tokens differ from reference"

    # 'text_tokens' already present -> must not be overwritten (matches the PyTorch branch).
    pre_existing = jnp.full((2, 8), 7, dtype=jnp.int32)
    ctx2 = {"text_prompts": prompts, "text_tokens": pre_existing}
    out_ctx2 = pre(ctx2)
    assert bool(jnp.all(out_ctx2["text_tokens"] == 7)), "existing text_tokens were overwritten"

    # --- Extra check of the Pallas copy path on a larger deterministic tensor ---
    x = jax.random.normal(key, (2, 4, 16, 16), dtype=jnp.float32)
    y = _pallas_device_copy(x)
    jax.block_until_ready(y)
    assert y.shape == x.shape and y.dtype == x.dtype
    assert bool(jnp.all(y == x)), "copy kernel did not reproduce input exactly"

    print("KERNEL_OK")
</pallas_src>

<mosaic_0001>
module attributes {stable_mosaic.version = 11 : i64} {
  func.func @_copy_kernel(%arg0: i32, %arg1: memref<8x128xi32, #tpu.memory_space<vmem>>, %arg2: memref<8x128xi32, #tpu.memory_space<vmem>>) attributes {dimension_semantics = [#tpu.dimension_semantics<parallel>], iteration_bounds = array<i64: 1>, scalar_prefetch = 0 : i64, scratch_operands = 0 : i64, tpu.core_type = #tpu.core_type<tc>, window_params = [{transform_indices = @transform_0, window_bounds = array<i64: 8, 128>}, {transform_indices = @transform_1, window_bounds = array<i64: 8, 128>}]} {
    %c0 = arith.constant 0 : index
    %c0_0 = arith.constant 0 : index
    %0 = vector.load %arg1[%c0, %c0_0] : memref<8x128xi32, #tpu.memory_space<vmem>>, vector<8x128xi32>
    %c0_1 = arith.constant 0 : index
    %c0_2 = arith.constant 0 : index
    %1 = vector.load %arg2[%c0_1, %c0_2] : memref<8x128xi32, #tpu.memory_space<vmem>>, vector<8x128xi32>
    tpu.vector_store %arg2[%c0_1, %c0_2], %0 {strides = array<i32>} : memref<8x128xi32, #tpu.memory_space<vmem>>, vector<8x128xi32>,
    return
  }
  func.func @transform_0(%arg0: i32) -> (i32, i32) {
    %c0_i32 = arith.constant 0 : i32
    %c0_i32_0 = arith.constant 0 : i32
    return %arg0, %c0_i32 : i32, i32
  }
  func.func @transform_1(%arg0: i32) -> (i32, i32) {
    %c0_i32 = arith.constant 0 : i32
    %c0_i32_0 = arith.constant 0 : i32
    return %arg0, %c0_i32 : i32, i32
  }
}

</mosaic_0001>

<llo_original>
// kernel: tpu_custom_call.1
$region0: #{tpu_custom_call.1}
  #allocation0 [shape = 'u32[]', space=smem, size = 0x4, offset = 0x4, fixed_abs, tag = 'smem constant byte address 0x4 - core index']
  #allocation1 [shape = 'u32[144,128]{1,0:T(1,128)}', space=vmem, size = 0x12000, scoped, tag = 'internal scratch']
  %s0 = inlined_call_operand.hbm [shape: s32[8,128], index: 0, kind: input, shape index: {}]
  %s1 = inlined_call_operand.hbm [shape: s32[8,128], index: 1, kind: output, shape index: {}]
  %s2 = sld [smem:[#allocation0]]
  $region18: #{tpu_custom_call.1} parent=0
    _
  %s4 = ssub.s32 1, %s2
  %s5 = scalar_select 0, %s4, %s2
  $region1: #{tpu_custom_call.1} parent=0
    #allocation2 [shape = 'u8[4096]{0}', space=vmem, size = 0x1000, scoped, tag = 'input window, operand 0, single buffered']
    #allocation3 [shape = 's32[1]{0}', space=sflag, size = 0x4, scoped, tag = 'scoped memory for tpu_custom_call.1']
    #allocation4 [shape = 's32[1]{0}', space=sflag, size = 0x4, scoped, tag = 'scoped memory for tpu_custom_call.1']
    #allocation5 [shape = 'u8[4096]{0}', space=vmem, size = 0x1000, scoped, tag = 'output window, operand 0, single buffered']
    %6 = vsyncpa [#allocation3], 0
    %7 = vsyncpa [#allocation4], 0
    // Predicated region
    $region2: #{tpu_custom_call.1} parent=1 // pred_check
      _
    $region3: #{tpu_custom_call.1} parent=1 // pred_check_branch
      %9 = sbr.rel (0) target = $region5
    $region4: #{tpu_custom_call.1} parent=1 // pred_region
      %s11 = ssub.s32 128, 128
      %12 = vsyncadd [#allocation3], %s11
      %s14 = sshll.u32 [#allocation2], 4
      %s15 = int_to_ptr.vmem [resolvable:$true] %s14
      %17 = dma.hbm_to_vmem [thread:$0]  %s0, 128, %s15, [#allocation3]
    $region5: #{tpu_custom_call.1} parent=1 // pred_fallthru
      _
    // Predicated region
    $region6: #{tpu_custom_call.1} parent=1 // pred_check
      _
    $region7: #{tpu_custom_call.1} parent=1 // pred_check_branch
      %19 = sbr.rel (0) target = $region9
    $region8: #{tpu_custom_call.1} parent=1 // pred_region
      %20 = dma.done [#allocation3], 128
    $region9: #{tpu_custom_call.1} parent=1 // pred_fallthru
      _
    %v21 = vld [vmem:[#allocation2] sm:$0xff]
    %22 = vst [vmem:[#allocation5] sm:$0xff] %v21
    // Predicated region
    $region10: #{tpu_custom_call.1} parent=1 // pred_check
      _
    $region11: #{tpu_custom_call.1} parent=1 // pred_check_branch
      %24 = sbr.rel (0) target = $region13
    $region12: #{tpu_custom_call.1} parent=1 // pred_region
      %s26 = ssub.s32 128, 128
      %27 = vsyncadd [#allocation4], %s26
      %s29 = sshll.u32 [#allocation5], 4
      %s30 = int_to_ptr.vmem [resolvable:$true] %s29
      %32 = dma.vmem_to_hbm [thread:$0]  %s30, 128, %s1, [#allocation4]
    $region13: #{tpu_custom_call.1} parent=1 // pred_fallthru
      _
    // Predicated region
    $region14: #{tpu_custom_call.1} parent=1 // pred_check
      _
    $region15: #{tpu_custom_call.1} parent=1 // pred_check_branch
      %34 = sbr.rel (0) target = $region17
    $region16: #{tpu_custom_call.1} parent=1 // pred_region
      %35 = dma.done [#allocation4], 128
    $region17: #{tpu_custom_call.1} parent=1 // pred_fallthru
      _
    %36 = vsyncpa [#allocation3], 1
    %37 = vsyncpa [#allocation4], 1

</llo_original>
